<compile_context>
chip_gen: v7x
topology: tpu7x:2x2x1
jax: 0.10.0
libtpu: 0.0.40
codegen_flags: <defaults>
</compile_context>

<pallas_src>
import numpy as np
import jax
import jax.numpy as jnp
from jax.experimental import pallas as pl
from jax.experimental.pallas import tpu as pltpu


# ---------------------------------------------------------------------------
# Fixed generator basis (mirrors HomographyNet.__init__) -- only used by the
# pure-JAX reference; the kernel hard-codes the sparse structure.
# ---------------------------------------------------------------------------
def _make_basis_np(dof="perspective"):
    B = np.zeros((8, 3, 3), dtype=np.float32)
    B[0, 0, 2] = 1.0
    B[1, 1, 2] = 1.0
    B[2, 0, 1] = 1.0
    B[3, 1, 0] = 1.0
    B[4, 0, 0], B[4, 1, 1] = 1.0, -1.0
    B[5, 1, 1], B[5, 2, 2] = -1.0, 1.0
    if dof == "perspective":
        B[6, 2, 0] = 1.0
        B[7, 2, 1] = 1.0
    return B


def make_basis(dof="perspective"):
    return jnp.asarray(_make_basis_np(dof))


# ---------------------------------------------------------------------------
# Batched kernel.
#   v_ref: (8, C, 8, 128)  -- row k = weight k; each [k, c] slice is one full
#                             (8,128) vreg covering 1024 batch items.
#   H_ref: (9, C, 8, 128)  -- row 3*a+b = H[a, b] for the same items.
# ---------------------------------------------------------------------------
_SUB, _LANE = 8, 128
_CHUNK = _SUB * _LANE            # 1024 items per vreg-chunk
_MAX_CHUNKS_PER_BLOCK = 16       # up to 16K items per grid step


def _homography_batch_kernel(v_ref, H_ref):
    n_chunks = v_ref.shape[1]    # compile-time constant (block dim)

    @pl.loop(0, n_chunks)
    def _(c):
        # Load the 8 weight vregs for this chunk (each (8,128)).
        v = [v_ref[k, c] for k in range(8)]

        # C = sum_k v[k] * B[k] with the fixed sparse basis folded in.
        C = [[v[4],             v[2], v[0]],
             [v[3], -(v[4] + v[5]),  v[1]],
             [v[6],             v[7], v[5]]]

        # Truncated exp: H = I + sum_{i=1..9} C^i / i!
        # i = 1 special-cased: A = C, H = I + C.
        A = [[C[a][b] for b in range(3)] for a in range(3)]
        H = [[(C[a][b] + np.float32(1.0)) if a == b else C[a][b]
              for b in range(3)] for a in range(3)]

        for i in range(2, 10):
            r = np.float32(1.0 / i)            # trace-time constant
            A = [[(A[a][0] * C[0][b] + A[a][1] * C[1][b] + A[a][2] * C[2][b]) * r
                  for b in range(3)] for a in range(3)]
            H = [[H[a][b] + A[a][b] for b in range(3)] for a in range(3)]

        # Direct per-entry stores (plain vst, no concatenate/assembly).
        for a in range(3):
            for b in range(3):
                H_ref[3 * a + b, c] = H[a][b]


# ---------------------------------------------------------------------------
# SoA entry point: (8, N) weights -> (9, n_pad) homography entries.
# No wrapper-side transposes; the reshape to chunked layout is contiguous.
# ---------------------------------------------------------------------------
def homography_forward_soa(v_soa):
    v_soa = jnp.asarray(v_soa, dtype=jnp.float32)
    N = v_soa.shape[1]

    n_chunks = -(-N // _CHUNK)
    cpb = min(_MAX_CHUNKS_PER_BLOCK, n_chunks)
    n_blocks = -(-n_chunks // cpb)
    n_chunks_pad = n_blocks * cpb
    n_pad = n_chunks_pad * _CHUNK

    # Zero-pad so garbage lanes/sublanes never feed the series (padded items
    # produce identity matrices and are sliced off by callers).
    v_p = jnp.pad(v_soa, ((0, 0), (0, n_pad - N)))
    v_blk = v_p.reshape(8, n_chunks_pad, _SUB, _LANE)

    out = pl.pallas_call(
        _homography_batch_kernel,
        out_shape=jax.ShapeDtypeStruct((9, n_chunks_pad, _SUB, _LANE),
                                       jnp.float32),
        grid=(n_blocks,),
        in_specs=[pl.BlockSpec((8, cpb, _SUB, _LANE), lambda i: (0, i, 0, 0))],
        out_specs=pl.BlockSpec((9, cpb, _SUB, _LANE), lambda i: (0, i, 0, 0)),
        compiler_params=pltpu.CompilerParams(
            dimension_semantics=("parallel",)),   # v7x megacore when grid >= 2
    )(v_blk)

    return out.reshape(9, n_pad)


# ---------------------------------------------------------------------------
# Convenience wrappers (AoS <-> SoA layout plumbing lives here, not in-kernel).
# ---------------------------------------------------------------------------
def homography_forward_batched(v_batch, dof="perspective"):
    """v_batch: (N, 8) weights -> (N, 3, 3) homographies."""
    v_batch = jnp.asarray(v_batch, dtype=jnp.float32)
    N = v_batch.shape[0]
    if dof != "perspective":
        # Non-perspective basis has zero generators 6,7 -> equivalent to v[6:8]=0.
        v_batch = v_batch.at[:, 6:8].set(0.0)
    H_soa = homography_forward_soa(v_batch.T)        # (9, n_pad)
    return H_soa[:, :N].T.reshape(N, 3, 3)


def homography_forward(v, dof="perspective"):
    """Pallas equivalent of HomographyNet.forward(); use -v for .inverse()."""
    v = jnp.asarray(v, dtype=jnp.float32).reshape(1, 8)
    return homography_forward_batched(v, dof)[0]


# ---------------------------------------------------------------------------
# Pure-JAX reference mirroring the PyTorch MatrixExp().
# ---------------------------------------------------------------------------
def matrix_exp_ref(B, v):
    C = jnp.sum(B * v, axis=0)
    A = jnp.eye(3, dtype=jnp.float32)
    H = jnp.eye(3, dtype=jnp.float32)
    for i in range(1, 10):
        A = (A / i) @ C
        H = H + A
    return H


if __name__ == "__main__":
    key = jax.random.PRNGKey(0)
    B = make_basis("perspective")
    # nn.Parameter is zeros in __init__ (forward would trivially be identity);
    # draw small deterministic weights so the series is actually exercised.
    v = 0.1 * jax.random.normal(key, (8,), dtype=jnp.float32)

    # Forward (single homography, like HomographyNet.forward()).
    H = jax.block_until_ready(homography_forward(v))
    H_ref = matrix_exp_ref(B, v.reshape(8, 1, 1))
    assert H.shape == (3, 3) and H.dtype == jnp.float32
    assert jnp.allclose(H, H_ref, atol=1e-5, rtol=1e-5)

    # Inverse path (forward with -v), as in the module.
    H_inv = jax.block_until_ready(homography_forward(-v))
    assert jnp.allclose(H_inv, matrix_exp_ref(B, -v.reshape(8, 1, 1)),
                        atol=1e-5, rtol=1e-5)

    # Batched throughput path (full-vreg SoA layout, chunk loop in-kernel).
    n_batch = 6
    vb = 0.1 * jax.random.normal(jax.random.PRNGKey(1), (n_batch, 8),
                                 dtype=jnp.float32)
    Hb = jax.block_until_ready(homography_forward_batched(vb))
    Hb_ref = jnp.stack([matrix_exp_ref(B, vb[n].reshape(8, 1, 1))
                        for n in range(n_batch)])
    assert Hb.shape == (n_batch, 3, 3)
    assert jnp.allclose(Hb, Hb_ref, atol=1e-5, rtol=1e-5)

    print("KERNEL_OK")
</pallas_src>

<mosaic_0001>
module attributes {stable_mosaic.version = 11 : i64} {
  func.func @_homography_batch_kernel(%arg0: i32, %arg1: memref<8x1x8x128xf32, #tpu.memory_space<vmem>>, %arg2: memref<9x1x8x128xf32, #tpu.memory_space<vmem>>) attributes {dimension_semantics = [#tpu.dimension_semantics<parallel>], iteration_bounds = array<i64: 1>, scalar_prefetch = 0 : i64, scratch_operands = 0 : i64, tpu.core_type = #tpu.core_type<tc>, window_params = [{transform_indices = @transform_0, window_bounds = array<i64: 8, 1, 8, 128>}, {transform_indices = @transform_1, window_bounds = array<i64: 9, 1, 8, 128>}]} {
    %c0_i32 = arith.constant 0 : i32
    %c1_i32 = arith.constant 1 : i32
    %0 = arith.muli %c0_i32, %c1_i32 : i32
    %c0_i32_0 = arith.constant 0 : i32
    %1 = arith.addi %c0_i32_0, %0 : i32
    %c0 = arith.constant 0 : index
    %2 = arith.index_cast %1 : i32 to index
    %c0_1 = arith.constant 0 : index
    %c0_2 = arith.constant 0 : index
    %3 = vector.load %arg1[%c0, %2, %c0_1, %c0_2] : memref<8x1x8x128xf32, #tpu.memory_space<vmem>>, vector<1x1x8x128xf32>
    %4 = vector.shape_cast %3 : vector<1x1x8x128xf32> to vector<8x128xf32>
    %c1 = arith.constant 1 : index
    %5 = arith.index_cast %1 : i32 to index
    %c0_3 = arith.constant 0 : index
    %c0_4 = arith.constant 0 : index
    %6 = vector.load %arg1[%c1, %5, %c0_3, %c0_4] : memref<8x1x8x128xf32, #tpu.memory_space<vmem>>, vector<1x1x8x128xf32>
    %7 = vector.shape_cast %6 : vector<1x1x8x128xf32> to vector<8x128xf32>
    %c2 = arith.constant 2 : index
    %8 = arith.index_cast %1 : i32 to index
    %c0_5 = arith.constant 0 : index
    %c0_6 = arith.constant 0 : index
    %9 = vector.load %arg1[%c2, %8, %c0_5, %c0_6] : memref<8x1x8x128xf32, #tpu.memory_space<vmem>>, vector<1x1x8x128xf32>
    %10 = vector.shape_cast %9 : vector<1x1x8x128xf32> to vector<8x128xf32>
    %c3 = arith.constant 3 : index
    %11 = arith.index_cast %1 : i32 to index
    %c0_7 = arith.constant 0 : index
    %c0_8 = arith.constant 0 : index
    %12 = vector.load %arg1[%c3, %11, %c0_7, %c0_8] : memref<8x1x8x128xf32, #tpu.memory_space<vmem>>, vector<1x1x8x128xf32>
    %13 = vector.shape_cast %12 : vector<1x1x8x128xf32> to vector<8x128xf32>
    %c4 = arith.constant 4 : index
    %14 = arith.index_cast %1 : i32 to index
    %c0_9 = arith.constant 0 : index
    %c0_10 = arith.constant 0 : index
    %15 = vector.load %arg1[%c4, %14, %c0_9, %c0_10] : memref<8x1x8x128xf32, #tpu.memory_space<vmem>>, vector<1x1x8x128xf32>
    %16 = vector.shape_cast %15 : vector<1x1x8x128xf32> to vector<8x128xf32>
    %c5 = arith.constant 5 : index
    %17 = arith.index_cast %1 : i32 to index
    %c0_11 = arith.constant 0 : index
    %c0_12 = arith.constant 0 : index
    %18 = vector.load %arg1[%c5, %17, %c0_11, %c0_12] : memref<8x1x8x128xf32, #tpu.memory_space<vmem>>, vector<1x1x8x128xf32>
    %19 = vector.shape_cast %18 : vector<1x1x8x128xf32> to vector<8x128xf32>
    %c6 = arith.constant 6 : index
    %20 = arith.index_cast %1 : i32 to index
    %c0_13 = arith.constant 0 : index
    %c0_14 = arith.constant 0 : index
    %21 = vector.load %arg1[%c6, %20, %c0_13, %c0_14] : memref<8x1x8x128xf32, #tpu.memory_space<vmem>>, vector<1x1x8x128xf32>
    %22 = vector.shape_cast %21 : vector<1x1x8x128xf32> to vector<8x128xf32>
    %c7 = arith.constant 7 : index
    %23 = arith.index_cast %1 : i32 to index
    %c0_15 = arith.constant 0 : index
    %c0_16 = arith.constant 0 : index
    %24 = vector.load %arg1[%c7, %23, %c0_15, %c0_16] : memref<8x1x8x128xf32, #tpu.memory_space<vmem>>, vector<1x1x8x128xf32>
    %25 = vector.shape_cast %24 : vector<1x1x8x128xf32> to vector<8x128xf32>
    %26 = arith.addf %16, %19 : vector<8x128xf32>
    %cst = arith.constant 0.000000e+00 : f32
    %27 = vector.broadcast %cst : f32 to vector<8x128xf32>
    %28 = arith.subf %27, %26 : vector<8x128xf32>
    %cst_17 = arith.constant 1.000000e+00 : f32
    %29 = vector.broadcast %cst_17 : f32 to vector<8x128xf32>
    %30 = arith.addf %16, %29 : vector<8x128xf32>
    %cst_18 = arith.constant 1.000000e+00 : f32
    %31 = vector.broadcast %cst_18 : f32 to vector<8x128xf32>
    %32 = arith.addf %28, %31 : vector<8x128xf32>
    %cst_19 = arith.constant 1.000000e+00 : f32
    %33 = vector.broadcast %cst_19 : f32 to vector<8x128xf32>
    %34 = arith.addf %19, %33 : vector<8x128xf32>
    %35 = arith.mulf %16, %16 : vector<8x128xf32>
    %36 = arith.mulf %10, %13 : vector<8x128xf32>
    %37 = arith.addf %35, %36 : vector<8x128xf32>
    %38 = arith.mulf %4, %22 : vector<8x128xf32>
    %39 = arith.addf %37, %38 : vector<8x128xf32>
    %cst_20 = arith.constant 5.000000e-01 : f32
    %40 = vector.broadcast %cst_20 : f32 to vector<8x128xf32>
    %41 = arith.mulf %39, %40 : vector<8x128xf32>
    %42 = arith.mulf %16, %10 : vector<8x128xf32>
    %43 = arith.mulf %10, %28 : vector<8x128xf32>
    %44 = arith.addf %42, %43 : vector<8x128xf32>
    %45 = arith.mulf %4, %25 : vector<8x128xf32>
    %46 = arith.addf %44, %45 : vector<8x128xf32>
    %cst_21 = arith.constant 5.000000e-01 : f32
    %47 = vector.broadcast %cst_21 : f32 to vector<8x128xf32>
    %48 = arith.mulf %46, %47 : vector<8x128xf32>
    %49 = arith.mulf %16, %4 : vector<8x128xf32>
    %50 = arith.mulf %10, %7 : vector<8x128xf32>
    %51 = arith.addf %49, %50 : vector<8x128xf32>
    %52 = arith.mulf %4, %19 : vector<8x128xf32>
    %53 = arith.addf %51, %52 : vector<8x128xf32>
    %cst_22 = arith.constant 5.000000e-01 : f32
    %54 = vector.broadcast %cst_22 : f32 to vector<8x128xf32>
    %55 = arith.mulf %53, %54 : vector<8x128xf32>
    %56 = arith.mulf %13, %16 : vector<8x128xf32>
    %57 = arith.mulf %28, %13 : vector<8x128xf32>
    %58 = arith.addf %56, %57 : vector<8x128xf32>
    %59 = arith.mulf %7, %22 : vector<8x128xf32>
    %60 = arith.addf %58, %59 : vector<8x128xf32>
    %cst_23 = arith.constant 5.000000e-01 : f32
    %61 = vector.broadcast %cst_23 : f32 to vector<8x128xf32>
    %62 = arith.mulf %60, %61 : vector<8x128xf32>
    %63 = arith.mulf %13, %10 : vector<8x128xf32>
    %64 = arith.mulf %28, %28 : vector<8x128xf32>
    %65 = arith.addf %63, %64 : vector<8x128xf32>
    %66 = arith.mulf %7, %25 : vector<8x128xf32>
    %67 = arith.addf %65, %66 : vector<8x128xf32>
    %cst_24 = arith.constant 5.000000e-01 : f32
    %68 = vector.broadcast %cst_24 : f32 to vector<8x128xf32>
    %69 = arith.mulf %67, %68 : vector<8x128xf32>
    %70 = arith.mulf %13, %4 : vector<8x128xf32>
    %71 = arith.mulf %28, %7 : vector<8x128xf32>
    %72 = arith.addf %70, %71 : vector<8x128xf32>
    %73 = arith.mulf %7, %19 : vector<8x128xf32>
    %74 = arith.addf %72, %73 : vector<8x128xf32>
    %cst_25 = arith.constant 5.000000e-01 : f32
    %75 = vector.broadcast %cst_25 : f32 to vector<8x128xf32>
    %76 = arith.mulf %74, %75 : vector<8x128xf32>
    %77 = arith.mulf %22, %16 : vector<8x128xf32>
    %78 = arith.mulf %25, %13 : vector<8x128xf32>
    %79 = arith.addf %77, %78 : vector<8x128xf32>
    %80 = arith.mulf %19, %22 : vector<8x128xf32>
    %81 = arith.addf %79, %80 : vector<8x128xf32>
    %cst_26 = arith.constant 5.000000e-01 : f32
    %82 = vector.broadcast %cst_26 : f32 to vector<8x128xf32>
    %83 = arith.mulf %81, %82 : vector<8x128xf32>
    %84 = arith.mulf %22, %10 : vector<8x128xf32>
    %85 = arith.mulf %25, %28 : vector<8x128xf32>
    %86 = arith.addf %84, %85 : vector<8x128xf32>
    %87 = arith.mulf %19, %25 : vector<8x128xf32>
    %88 = arith.addf %86, %87 : vector<8x128xf32>
    %cst_27 = arith.constant 5.000000e-01 : f32
    %89 = vector.broadcast %cst_27 : f32 to vector<8x128xf32>
    %90 = arith.mulf %88, %89 : vector<8x128xf32>
    %91 = arith.mulf %22, %4 : vector<8x128xf32>
    %92 = arith.mulf %25, %7 : vector<8x128xf32>
    %93 = arith.addf %91, %92 : vector<8x128xf32>
    %94 = arith.mulf %19, %19 : vector<8x128xf32>
    %95 = arith.addf %93, %94 : vector<8x128xf32>
    %cst_28 = arith.constant 5.000000e-01 : f32
    %96 = vector.broadcast %cst_28 : f32 to vector<8x128xf32>
    %97 = arith.mulf %95, %96 : vector<8x128xf32>
    %98 = arith.addf %30, %41 : vector<8x128xf32>
    %99 = arith.addf %10, %48 : vector<8x128xf32>
    %100 = arith.addf %4, %55 : vector<8x128xf32>
    %101 = arith.addf %13, %62 : vector<8x128xf32>
    %102 = arith.addf %32, %69 : vector<8x128xf32>
    %103 = arith.addf %7, %76 : vector<8x128xf32>
    %104 = arith.addf %22, %83 : vector<8x128xf32>
    %105 = arith.addf %25, %90 : vector<8x128xf32>
    %106 = arith.addf %34, %97 : vector<8x128xf32>
    %107 = arith.mulf %41, %16 : vector<8x128xf32>
    %108 = arith.mulf %48, %13 : vector<8x128xf32>
    %109 = arith.addf %107, %108 : vector<8x128xf32>
    %110 = arith.mulf %55, %22 : vector<8x128xf32>
    %111 = arith.addf %109, %110 : vector<8x128xf32>
    %cst_29 = arith.constant 0.333333343 : f32
    %112 = vector.broadcast %cst_29 : f32 to vector<8x128xf32>
    %113 = arith.mulf %111, %112 : vector<8x128xf32>
    %114 = arith.mulf %41, %10 : vector<8x128xf32>
    %115 = arith.mulf %48, %28 : vector<8x128xf32>
    %116 = arith.addf %114, %115 : vector<8x128xf32>
    %117 = arith.mulf %55, %25 : vector<8x128xf32>
    %118 = arith.addf %116, %117 : vector<8x128xf32>
    %cst_30 = arith.constant 0.333333343 : f32
    %119 = vector.broadcast %cst_30 : f32 to vector<8x128xf32>
    %120 = arith.mulf %118, %119 : vector<8x128xf32>
    %121 = arith.mulf %41, %4 : vector<8x128xf32>
    %122 = arith.mulf %48, %7 : vector<8x128xf32>
    %123 = arith.addf %121, %122 : vector<8x128xf32>
    %124 = arith.mulf %55, %19 : vector<8x128xf32>
    %125 = arith.addf %123, %124 : vector<8x128xf32>
    %cst_31 = arith.constant 0.333333343 : f32
    %126 = vector.broadcast %cst_31 : f32 to vector<8x128xf32>
    %127 = arith.mulf %125, %126 : vector<8x128xf32>
    %128 = arith.mulf %62, %16 : vector<8x128xf32>
    %129 = arith.mulf %69, %13 : vector<8x128xf32>
    %130 = arith.addf %128, %129 : vector<8x128xf32>
    %131 = arith.mulf %76, %22 : vector<8x128xf32>
    %132 = arith.addf %130, %131 : vector<8x128xf32>
    %cst_32 = arith.constant 0.333333343 : f32
    %133 = vector.broadcast %cst_32 : f32 to vector<8x128xf32>
    %134 = arith.mulf %132, %133 : vector<8x128xf32>
    %135 = arith.mulf %62, %10 : vector<8x128xf32>
    %136 = arith.mulf %69, %28 : vector<8x128xf32>
    %137 = arith.addf %135, %136 : vector<8x128xf32>
    %138 = arith.mulf %76, %25 : vector<8x128xf32>
    %139 = arith.addf %137, %138 : vector<8x128xf32>
    %cst_33 = arith.constant 0.333333343 : f32
    %140 = vector.broadcast %cst_33 : f32 to vector<8x128xf32>
    %141 = arith.mulf %139, %140 : vector<8x128xf32>
    %142 = arith.mulf %62, %4 : vector<8x128xf32>
    %143 = arith.mulf %69, %7 : vector<8x128xf32>
    %144 = arith.addf %142, %143 : vector<8x128xf32>
    %145 = arith.mulf %76, %19 : vector<8x128xf32>
    %146 = arith.addf %144, %145 : vector<8x128xf32>
    %cst_34 = arith.constant 0.333333343 : f32
    %147 = vector.broadcast %cst_34 : f32 to vector<8x128xf32>
    %148 = arith.mulf %146, %147 : vector<8x128xf32>
    %149 = arith.mulf %83, %16 : vector<8x128xf32>
    %150 = arith.mulf %90, %13 : vector<8x128xf32>
    %151 = arith.addf %149, %150 : vector<8x128xf32>
    %152 = arith.mulf %97, %22 : vector<8x128xf32>
    %153 = arith.addf %151, %152 : vector<8x128xf32>
    %cst_35 = arith.constant 0.333333343 : f32
    %154 = vector.broadcast %cst_35 : f32 to vector<8x128xf32>
    %155 = arith.mulf %153, %154 : vector<8x128xf32>
    %156 = arith.mulf %83, %10 : vector<8x128xf32>
    %157 = arith.mulf %90, %28 : vector<8x128xf32>
    %158 = arith.addf %156, %157 : vector<8x128xf32>
    %159 = arith.mulf %97, %25 : vector<8x128xf32>
    %160 = arith.addf %158, %159 : vector<8x128xf32>
    %cst_36 = arith.constant 0.333333343 : f32
    %161 = vector.broadcast %cst_36 : f32 to vector<8x128xf32>
    %162 = arith.mulf %160, %161 : vector<8x128xf32>
    %163 = arith.mulf %83, %4 : vector<8x128xf32>
    %164 = arith.mulf %90, %7 : vector<8x128xf32>
    %165 = arith.addf %163, %164 : vector<8x128xf32>
    %166 = arith.mulf %97, %19 : vector<8x128xf32>
    %167 = arith.addf %165, %166 : vector<8x128xf32>
    %cst_37 = arith.constant 0.333333343 : f32
    %168 = vector.broadcast %cst_37 : f32 to vector<8x128xf32>
    %169 = arith.mulf %167, %168 : vector<8x128xf32>
    %170 = arith.addf %98, %113 : vector<8x128xf32>
    %171 = arith.addf %99, %120 : vector<8x128xf32>
    %172 = arith.addf %100, %127 : vector<8x128xf32>
    %173 = arith.addf %101, %134 : vector<8x128xf32>
    %174 = arith.addf %102, %141 : vector<8x128xf32>
    %175 = arith.addf %103, %148 : vector<8x128xf32>
    %176 = arith.addf %104, %155 : vector<8x128xf32>
    %177 = arith.addf %105, %162 : vector<8x128xf32>
    %178 = arith.addf %106, %169 : vector<8x128xf32>
    %179 = arith.mulf %113, %16 : vector<8x128xf32>
    %180 = arith.mulf %120, %13 : vector<8x128xf32>
    %181 = arith.addf %179, %180 : vector<8x128xf32>
    %182 = arith.mulf %127, %22 : vector<8x128xf32>
    %183 = arith.addf %181, %182 : vector<8x128xf32>
    %cst_38 = arith.constant 2.500000e-01 : f32
    %184 = vector.broadcast %cst_38 : f32 to vector<8x128xf32>
    %185 = arith.mulf %183, %184 : vector<8x128xf32>
    %186 = arith.mulf %113, %10 : vector<8x128xf32>
    %187 = arith.mulf %120, %28 : vector<8x128xf32>
    %188 = arith.addf %186, %187 : vector<8x128xf32>
    %189 = arith.mulf %127, %25 : vector<8x128xf32>
    %190 = arith.addf %188, %189 : vector<8x128xf32>
    %cst_39 = arith.constant 2.500000e-01 : f32
    %191 = vector.broadcast %cst_39 : f32 to vector<8x128xf32>
    %192 = arith.mulf %190, %191 : vector<8x128xf32>
    %193 = arith.mulf %113, %4 : vector<8x128xf32>
    %194 = arith.mulf %120, %7 : vector<8x128xf32>
    %195 = arith.addf %193, %194 : vector<8x128xf32>
    %196 = arith.mulf %127, %19 : vector<8x128xf32>
    %197 = arith.addf %195, %196 : vector<8x128xf32>
    %cst_40 = arith.constant 2.500000e-01 : f32
    %198 = vector.broadcast %cst_40 : f32 to vector<8x128xf32>
    %199 = arith.mulf %197, %198 : vector<8x128xf32>
    %200 = arith.mulf %134, %16 : vector<8x128xf32>
    %201 = arith.mulf %141, %13 : vector<8x128xf32>
    %202 = arith.addf %200, %201 : vector<8x128xf32>
    %203 = arith.mulf %148, %22 : vector<8x128xf32>
    %204 = arith.addf %202, %203 : vector<8x128xf32>
    %cst_41 = arith.constant 2.500000e-01 : f32
    %205 = vector.broadcast %cst_41 : f32 to vector<8x128xf32>
    %206 = arith.mulf %204, %205 : vector<8x128xf32>
    %207 = arith.mulf %134, %10 : vector<8x128xf32>
    %208 = arith.mulf %141, %28 : vector<8x128xf32>
    %209 = arith.addf %207, %208 : vector<8x128xf32>
    %210 = arith.mulf %148, %25 : vector<8x128xf32>
    %211 = arith.addf %209, %210 : vector<8x128xf32>
    %cst_42 = arith.constant 2.500000e-01 : f32
    %212 = vector.broadcast %cst_42 : f32 to vector<8x128xf32>
    %213 = arith.mulf %211, %212 : vector<8x128xf32>
    %214 = arith.mulf %134, %4 : vector<8x128xf32>
    %215 = arith.mulf %141, %7 : vector<8x128xf32>
    %216 = arith.addf %214, %215 : vector<8x128xf32>
    %217 = arith.mulf %148, %19 : vector<8x128xf32>
    %218 = arith.addf %216, %217 : vector<8x128xf32>
    %cst_43 = arith.constant 2.500000e-01 : f32
    %219 = vector.broadcast %cst_43 : f32 to vector<8x128xf32>
    %220 = arith.mulf %218, %219 : vector<8x128xf32>
    %221 = arith.mulf %155, %16 : vector<8x128xf32>
    %222 = arith.mulf %162, %13 : vector<8x128xf32>
    %223 = arith.addf %221, %222 : vector<8x128xf32>
    %224 = arith.mulf %169, %22 : vector<8x128xf32>
    %225 = arith.addf %223, %224 : vector<8x128xf32>
    %cst_44 = arith.constant 2.500000e-01 : f32
    %226 = vector.broadcast %cst_44 : f32 to vector<8x128xf32>
    %227 = arith.mulf %225, %226 : vector<8x128xf32>
    %228 = arith.mulf %155, %10 : vector<8x128xf32>
    %229 = arith.mulf %162, %28 : vector<8x128xf32>
    %230 = arith.addf %228, %229 : vector<8x128xf32>
    %231 = arith.mulf %169, %25 : vector<8x128xf32>
    %232 = arith.addf %230, %231 : vector<8x128xf32>
    %cst_45 = arith.constant 2.500000e-01 : f32
    %233 = vector.broadcast %cst_45 : f32 to vector<8x128xf32>
    %234 = arith.mulf %232, %233 : vector<8x128xf32>
    %235 = arith.mulf %155, %4 : vector<8x128xf32>
    %236 = arith.mulf %162, %7 : vector<8x128xf32>
    %237 = arith.addf %235, %236 : vector<8x128xf32>
    %238 = arith.mulf %169, %19 : vector<8x128xf32>
    %239 = arith.addf %237, %238 : vector<8x128xf32>
    %cst_46 = arith.constant 2.500000e-01 : f32
    %240 = vector.broadcast %cst_46 : f32 to vector<8x128xf32>
    %241 = arith.mulf %239, %240 : vector<8x128xf32>
    %242 = arith.addf %170, %185 : vector<8x128xf32>
    %243 = arith.addf %171, %192 : vector<8x128xf32>
    %244 = arith.addf %172, %199 : vector<8x128xf32>
    %245 = arith.addf %173, %206 : vector<8x128xf32>
    %246 = arith.addf %174, %213 : vector<8x128xf32>
    %247 = arith.addf %175, %220 : vector<8x128xf32>
    %248 = arith.addf %176, %227 : vector<8x128xf32>
    %249 = arith.addf %177, %234 : vector<8x128xf32>
    %250 = arith.addf %178, %241 : vector<8x128xf32>
    %251 = arith.mulf %185, %16 : vector<8x128xf32>
    %252 = arith.mulf %192, %13 : vector<8x128xf32>
    %253 = arith.addf %251, %252 : vector<8x128xf32>
    %254 = arith.mulf %199, %22 : vector<8x128xf32>
    %255 = arith.addf %253, %254 : vector<8x128xf32>
    %cst_47 = arith.constant 2.000000e-01 : f32
    %256 = vector.broadcast %cst_47 : f32 to vector<8x128xf32>
    %257 = arith.mulf %255, %256 : vector<8x128xf32>
    %258 = arith.mulf %185, %10 : vector<8x128xf32>
    %259 = arith.mulf %192, %28 : vector<8x128xf32>
    %260 = arith.addf %258, %259 : vector<8x128xf32>
    %261 = arith.mulf %199, %25 : vector<8x128xf32>
    %262 = arith.addf %260, %261 : vector<8x128xf32>
    %cst_48 = arith.constant 2.000000e-01 : f32
    %263 = vector.broadcast %cst_48 : f32 to vector<8x128xf32>
    %264 = arith.mulf %262, %263 : vector<8x128xf32>
    %265 = arith.mulf %185, %4 : vector<8x128xf32>
    %266 = arith.mulf %192, %7 : vector<8x128xf32>
    %267 = arith.addf %265, %266 : vector<8x128xf32>
    %268 = arith.mulf %199, %19 : vector<8x128xf32>
    %269 = arith.addf %267, %268 : vector<8x128xf32>
    %cst_49 = arith.constant 2.000000e-01 : f32
    %270 = vector.broadcast %cst_49 : f32 to vector<8x128xf32>
    %271 = arith.mulf %269, %270 : vector<8x128xf32>
    %272 = arith.mulf %206, %16 : vector<8x128xf32>
    %273 = arith.mulf %213, %13 : vector<8x128xf32>
    %274 = arith.addf %272, %273 : vector<8x128xf32>
    %275 = arith.mulf %220, %22 : vector<8x128xf32>
    %276 = arith.addf %274, %275 : vector<8x128xf32>
    %cst_50 = arith.constant 2.000000e-01 : f32
    %277 = vector.broadcast %cst_50 : f32 to vector<8x128xf32>
    %278 = arith.mulf %276, %277 : vector<8x128xf32>
    %279 = arith.mulf %206, %10 : vector<8x128xf32>
    %280 = arith.mulf %213, %28 : vector<8x128xf32>
    %281 = arith.addf %279, %280 : vector<8x128xf32>
    %282 = arith.mulf %220, %25 : vector<8x128xf32>
    %283 = arith.addf %281, %282 : vector<8x128xf32>
    %cst_51 = arith.constant 2.000000e-01 : f32
    %284 = vector.broadcast %cst_51 : f32 to vector<8x128xf32>
    %285 = arith.mulf %283, %284 : vector<8x128xf32>
    %286 = arith.mulf %206, %4 : vector<8x128xf32>
    %287 = arith.mulf %213, %7 : vector<8x128xf32>
    %288 = arith.addf %286, %287 : vector<8x128xf32>
    %289 = arith.mulf %220, %19 : vector<8x128xf32>
    %290 = arith.addf %288, %289 : vector<8x128xf32>
    %cst_52 = arith.constant 2.000000e-01 : f32
    %291 = vector.broadcast %cst_52 : f32 to vector<8x128xf32>
    %292 = arith.mulf %290, %291 : vector<8x128xf32>
    %293 = arith.mulf %227, %16 : vector<8x128xf32>
    %294 = arith.mulf %234, %13 : vector<8x128xf32>
    %295 = arith.addf %293, %294 : vector<8x128xf32>
    %296 = arith.mulf %241, %22 : vector<8x128xf32>
    %297 = arith.addf %295, %296 : vector<8x128xf32>
    %cst_53 = arith.constant 2.000000e-01 : f32
    %298 = vector.broadcast %cst_53 : f32 to vector<8x128xf32>
    %299 = arith.mulf %297, %298 : vector<8x128xf32>
    %300 = arith.mulf %227, %10 : vector<8x128xf32>
    %301 = arith.mulf %234, %28 : vector<8x128xf32>
    %302 = arith.addf %300, %301 : vector<8x128xf32>
    %303 = arith.mulf %241, %25 : vector<8x128xf32>
    %304 = arith.addf %302, %303 : vector<8x128xf32>
    %cst_54 = arith.constant 2.000000e-01 : f32
    %305 = vector.broadcast %cst_54 : f32 to vector<8x128xf32>
    %306 = arith.mulf %304, %305 : vector<8x128xf32>
    %307 = arith.mulf %227, %4 : vector<8x128xf32>
    %308 = arith.mulf %234, %7 : vector<8x128xf32>
    %309 = arith.addf %307, %308 : vector<8x128xf32>
    %310 = arith.mulf %241, %19 : vector<8x128xf32>
    %311 = arith.addf %309, %310 : vector<8x128xf32>
    %cst_55 = arith.constant 2.000000e-01 : f32
    %312 = vector.broadcast %cst_55 : f32 to vector<8x128xf32>
    %313 = arith.mulf %311, %312 : vector<8x128xf32>
    %314 = arith.addf %242, %257 : vector<8x128xf32>
    %315 = arith.addf %243, %264 : vector<8x128xf32>
    %316 = arith.addf %244, %271 : vector<8x128xf32>
    %317 = arith.addf %245, %278 : vector<8x128xf32>
    %318 = arith.addf %246, %285 : vector<8x128xf32>
    %319 = arith.addf %247, %292 : vector<8x128xf32>
    %320 = arith.addf %248, %299 : vector<8x128xf32>
    %321 = arith.addf %249, %306 : vector<8x128xf32>
    %322 = arith.addf %250, %313 : vector<8x128xf32>
    %323 = arith.mulf %257, %16 : vector<8x128xf32>
    %324 = arith.mulf %264, %13 : vector<8x128xf32>
    %325 = arith.addf %323, %324 : vector<8x128xf32>
    %326 = arith.mulf %271, %22 : vector<8x128xf32>
    %327 = arith.addf %325, %326 : vector<8x128xf32>
    %cst_56 = arith.constant 0.166666672 : f32
    %328 = vector.broadcast %cst_56 : f32 to vector<8x128xf32>
    %329 = arith.mulf %327, %328 : vector<8x128xf32>
    %330 = arith.mulf %257, %10 : vector<8x128xf32>
    %331 = arith.mulf %264, %28 : vector<8x128xf32>
    %332 = arith.addf %330, %331 : vector<8x128xf32>
    %333 = arith.mulf %271, %25 : vector<8x128xf32>
    %334 = arith.addf %332, %333 : vector<8x128xf32>
    %cst_57 = arith.constant 0.166666672 : f32
    %335 = vector.broadcast %cst_57 : f32 to vector<8x128xf32>
    %336 = arith.mulf %334, %335 : vector<8x128xf32>
    %337 = arith.mulf %257, %4 : vector<8x128xf32>
    %338 = arith.mulf %264, %7 : vector<8x128xf32>
    %339 = arith.addf %337, %338 : vector<8x128xf32>
    %340 = arith.mulf %271, %19 : vector<8x128xf32>
    %341 = arith.addf %339, %340 : vector<8x128xf32>
    %cst_58 = arith.constant 0.166666672 : f32
    %342 = vector.broadcast %cst_58 : f32 to vector<8x128xf32>
    %343 = arith.mulf %341, %342 : vector<8x128xf32>
    %344 = arith.mulf %278, %16 : vector<8x128xf32>
    %345 = arith.mulf %285, %13 : vector<8x128xf32>
    %346 = arith.addf %344, %345 : vector<8x128xf32>
    %347 = arith.mulf %292, %22 : vector<8x128xf32>
    %348 = arith.addf %346, %347 : vector<8x128xf32>
    %cst_59 = arith.constant 0.166666672 : f32
    %349 = vector.broadcast %cst_59 : f32 to vector<8x128xf32>
    %350 = arith.mulf %348, %349 : vector<8x128xf32>
    %351 = arith.mulf %278, %10 : vector<8x128xf32>
    %352 = arith.mulf %285, %28 : vector<8x128xf32>
    %353 = arith.addf %351, %352 : vector<8x128xf32>
    %354 = arith.mulf %292, %25 : vector<8x128xf32>
    %355 = arith.addf %353, %354 : vector<8x128xf32>
    %cst_60 = arith.constant 0.166666672 : f32
    %356 = vector.broadcast %cst_60 : f32 to vector<8x128xf32>
    %357 = arith.mulf %355, %356 : vector<8x128xf32>
    %358 = arith.mulf %278, %4 : vector<8x128xf32>
    %359 = arith.mulf %285, %7 : vector<8x128xf32>
    %360 = arith.addf %358, %359 : vector<8x128xf32>
    %361 = arith.mulf %292, %19 : vector<8x128xf32>
    %362 = arith.addf %360, %361 : vector<8x128xf32>
    %cst_61 = arith.constant 0.166666672 : f32
    %363 = vector.broadcast %cst_61 : f32 to vector<8x128xf32>
    %364 = arith.mulf %362, %363 : vector<8x128xf32>
    %365 = arith.mulf %299, %16 : vector<8x128xf32>
    %366 = arith.mulf %306, %13 : vector<8x128xf32>
    %367 = arith.addf %365, %366 : vector<8x128xf32>
    %368 = arith.mulf %313, %22 : vector<8x128xf32>
    %369 = arith.addf %367, %368 : vector<8x128xf32>
    %cst_62 = arith.constant 0.166666672 : f32
    %370 = vector.broadcast %cst_62 : f32 to vector<8x128xf32>
    %371 = arith.mulf %369, %370 : vector<8x128xf32>
    %372 = arith.mulf %299, %10 : vector<8x128xf32>
    %373 = arith.mulf %306, %28 : vector<8x128xf32>
    %374 = arith.addf %372, %373 : vector<8x128xf32>
    %375 = arith.mulf %313, %25 : vector<8x128xf32>
    %376 = arith.addf %374, %375 : vector<8x128xf32>
    %cst_63 = arith.constant 0.166666672 : f32
    %377 = vector.broadcast %cst_63 : f32 to vector<8x128xf32>
    %378 = arith.mulf %376, %377 : vector<8x128xf32>
    %379 = arith.mulf %299, %4 : vector<8x128xf32>
    %380 = arith.mulf %306, %7 : vector<8x128xf32>
    %381 = arith.addf %379, %380 : vector<8x128xf32>
    %382 = arith.mulf %313, %19 : vector<8x128xf32>
    %383 = arith.addf %381, %382 : vector<8x128xf32>
    %cst_64 = arith.constant 0.166666672 : f32
    %384 = vector.broadcast %cst_64 : f32 to vector<8x128xf32>
    %385 = arith.mulf %383, %384 : vector<8x128xf32>
    %386 = arith.addf %314, %329 : vector<8x128xf32>
    %387 = arith.addf %315, %336 : vector<8x128xf32>
    %388 = arith.addf %316, %343 : vector<8x128xf32>
    %389 = arith.addf %317, %350 : vector<8x128xf32>
    %390 = arith.addf %318, %357 : vector<8x128xf32>
    %391 = arith.addf %319, %364 : vector<8x128xf32>
    %392 = arith.addf %320, %371 : vector<8x128xf32>
    %393 = arith.addf %321, %378 : vector<8x128xf32>
    %394 = arith.addf %322, %385 : vector<8x128xf32>
    %395 = arith.mulf %329, %16 : vector<8x128xf32>
    %396 = arith.mulf %336, %13 : vector<8x128xf32>
    %397 = arith.addf %395, %396 : vector<8x128xf32>
    %398 = arith.mulf %343, %22 : vector<8x128xf32>
    %399 = arith.addf %397, %398 : vector<8x128xf32>
    %cst_65 = arith.constant 0.142857149 : f32
    %400 = vector.broadcast %cst_65 : f32 to vector<8x128xf32>
    %401 = arith.mulf %399, %400 : vector<8x128xf32>
    %402 = arith.mulf %329, %10 : vector<8x128xf32>
    %403 = arith.mulf %336, %28 : vector<8x128xf32>
    %404 = arith.addf %402, %403 : vector<8x128xf32>
    %405 = arith.mulf %343, %25 : vector<8x128xf32>
    %406 = arith.addf %404, %405 : vector<8x128xf32>
    %cst_66 = arith.constant 0.142857149 : f32
    %407 = vector.broadcast %cst_66 : f32 to vector<8x128xf32>
    %408 = arith.mulf %406, %407 : vector<8x128xf32>
    %409 = arith.mulf %329, %4 : vector<8x128xf32>
    %410 = arith.mulf %336, %7 : vector<8x128xf32>
    %411 = arith.addf %409, %410 : vector<8x128xf32>
    %412 = arith.mulf %343, %19 : vector<8x128xf32>
    %413 = arith.addf %411, %412 : vector<8x128xf32>
    %cst_67 = arith.constant 0.142857149 : f32
    %414 = vector.broadcast %cst_67 : f32 to vector<8x128xf32>
    %415 = arith.mulf %413, %414 : vector<8x128xf32>
    %416 = arith.mulf %350, %16 : vector<8x128xf32>
    %417 = arith.mulf %357, %13 : vector<8x128xf32>
    %418 = arith.addf %416, %417 : vector<8x128xf32>
    %419 = arith.mulf %364, %22 : vector<8x128xf32>
    %420 = arith.addf %418, %419 : vector<8x128xf32>
    %cst_68 = arith.constant 0.142857149 : f32
    %421 = vector.broadcast %cst_68 : f32 to vector<8x128xf32>
    %422 = arith.mulf %420, %421 : vector<8x128xf32>
    %423 = arith.mulf %350, %10 : vector<8x128xf32>
    %424 = arith.mulf %357, %28 : vector<8x128xf32>
    %425 = arith.addf %423, %424 : vector<8x128xf32>
    %426 = arith.mulf %364, %25 : vector<8x128xf32>
    %427 = arith.addf %425, %426 : vector<8x128xf32>
    %cst_69 = arith.constant 0.142857149 : f32
    %428 = vector.broadcast %cst_69 : f32 to vector<8x128xf32>
    %429 = arith.mulf %427, %428 : vector<8x128xf32>
    %430 = arith.mulf %350, %4 : vector<8x128xf32>
    %431 = arith.mulf %357, %7 : vector<8x128xf32>
    %432 = arith.addf %430, %431 : vector<8x128xf32>
    %433 = arith.mulf %364, %19 : vector<8x128xf32>
    %434 = arith.addf %432, %433 : vector<8x128xf32>
    %cst_70 = arith.constant 0.142857149 : f32
    %435 = vector.broadcast %cst_70 : f32 to vector<8x128xf32>
    %436 = arith.mulf %434, %435 : vector<8x128xf32>
    %437 = arith.mulf %371, %16 : vector<8x128xf32>
    %438 = arith.mulf %378, %13 : vector<8x128xf32>
    %439 = arith.addf %437, %438 : vector<8x128xf32>
    %440 = arith.mulf %385, %22 : vector<8x128xf32>
    %441 = arith.addf %439, %440 : vector<8x128xf32>
    %cst_71 = arith.constant 0.142857149 : f32
    %442 = vector.broadcast %cst_71 : f32 to vector<8x128xf32>
    %443 = arith.mulf %441, %442 : vector<8x128xf32>
    %444 = arith.mulf %371, %10 : vector<8x128xf32>
    %445 = arith.mulf %378, %28 : vector<8x128xf32>
    %446 = arith.addf %444, %445 : vector<8x128xf32>
    %447 = arith.mulf %385, %25 : vector<8x128xf32>
    %448 = arith.addf %446, %447 : vector<8x128xf32>
    %cst_72 = arith.constant 0.142857149 : f32
    %449 = vector.broadcast %cst_72 : f32 to vector<8x128xf32>
    %450 = arith.mulf %448, %449 : vector<8x128xf32>
    %451 = arith.mulf %371, %4 : vector<8x128xf32>
    %452 = arith.mulf %378, %7 : vector<8x128xf32>
    %453 = arith.addf %451, %452 : vector<8x128xf32>
    %454 = arith.mulf %385, %19 : vector<8x128xf32>
    %455 = arith.addf %453, %454 : vector<8x128xf32>
    %cst_73 = arith.constant 0.142857149 : f32
    %456 = vector.broadcast %cst_73 : f32 to vector<8x128xf32>
    %457 = arith.mulf %455, %456 : vector<8x128xf32>
    %458 = arith.addf %386, %401 : vector<8x128xf32>
    %459 = arith.addf %387, %408 : vector<8x128xf32>
    %460 = arith.addf %388, %415 : vector<8x128xf32>
    %461 = arith.addf %389, %422 : vector<8x128xf32>
    %462 = arith.addf %390, %429 : vector<8x128xf32>
    %463 = arith.addf %391, %436 : vector<8x128xf32>
    %464 = arith.addf %392, %443 : vector<8x128xf32>
    %465 = arith.addf %393, %450 : vector<8x128xf32>
    %466 = arith.addf %394, %457 : vector<8x128xf32>
    %467 = arith.mulf %401, %16 : vector<8x128xf32>
    %468 = arith.mulf %408, %13 : vector<8x128xf32>
    %469 = arith.addf %467, %468 : vector<8x128xf32>
    %470 = arith.mulf %415, %22 : vector<8x128xf32>
    %471 = arith.addf %469, %470 : vector<8x128xf32>
    %cst_74 = arith.constant 1.250000e-01 : f32
    %472 = vector.broadcast %cst_74 : f32 to vector<8x128xf32>
    %473 = arith.mulf %471, %472 : vector<8x128xf32>
    %474 = arith.mulf %401, %10 : vector<8x128xf32>
    %475 = arith.mulf %408, %28 : vector<8x128xf32>
    %476 = arith.addf %474, %475 : vector<8x128xf32>
    %477 = arith.mulf %415, %25 : vector<8x128xf32>
    %478 = arith.addf %476, %477 : vector<8x128xf32>
    %cst_75 = arith.constant 1.250000e-01 : f32
    %479 = vector.broadcast %cst_75 : f32 to vector<8x128xf32>
    %480 = arith.mulf %478, %479 : vector<8x128xf32>
    %481 = arith.mulf %401, %4 : vector<8x128xf32>
    %482 = arith.mulf %408, %7 : vector<8x128xf32>
    %483 = arith.addf %481, %482 : vector<8x128xf32>
    %484 = arith.mulf %415, %19 : vector<8x128xf32>
    %485 = arith.addf %483, %484 : vector<8x128xf32>
    %cst_76 = arith.constant 1.250000e-01 : f32
    %486 = vector.broadcast %cst_76 : f32 to vector<8x128xf32>
    %487 = arith.mulf %485, %486 : vector<8x128xf32>
    %488 = arith.mulf %422, %16 : vector<8x128xf32>
    %489 = arith.mulf %429, %13 : vector<8x128xf32>
    %490 = arith.addf %488, %489 : vector<8x128xf32>
    %491 = arith.mulf %436, %22 : vector<8x128xf32>
    %492 = arith.addf %490, %491 : vector<8x128xf32>
    %cst_77 = arith.constant 1.250000e-01 : f32
    %493 = vector.broadcast %cst_77 : f32 to vector<8x128xf32>
    %494 = arith.mulf %492, %493 : vector<8x128xf32>
    %495 = arith.mulf %422, %10 : vector<8x128xf32>
    %496 = arith.mulf %429, %28 : vector<8x128xf32>
    %497 = arith.addf %495, %496 : vector<8x128xf32>
    %498 = arith.mulf %436, %25 : vector<8x128xf32>
    %499 = arith.addf %497, %498 : vector<8x128xf32>
    %cst_78 = arith.constant 1.250000e-01 : f32
    %500 = vector.broadcast %cst_78 : f32 to vector<8x128xf32>
    %501 = arith.mulf %499, %500 : vector<8x128xf32>
    %502 = arith.mulf %422, %4 : vector<8x128xf32>
    %503 = arith.mulf %429, %7 : vector<8x128xf32>
    %504 = arith.addf %502, %503 : vector<8x128xf32>
    %505 = arith.mulf %436, %19 : vector<8x128xf32>
    %506 = arith.addf %504, %505 : vector<8x128xf32>
    %cst_79 = arith.constant 1.250000e-01 : f32
    %507 = vector.broadcast %cst_79 : f32 to vector<8x128xf32>
    %508 = arith.mulf %506, %507 : vector<8x128xf32>
    %509 = arith.mulf %443, %16 : vector<8x128xf32>
    %510 = arith.mulf %450, %13 : vector<8x128xf32>
    %511 = arith.addf %509, %510 : vector<8x128xf32>
    %512 = arith.mulf %457, %22 : vector<8x128xf32>
    %513 = arith.addf %511, %512 : vector<8x128xf32>
    %cst_80 = arith.constant 1.250000e-01 : f32
    %514 = vector.broadcast %cst_80 : f32 to vector<8x128xf32>
    %515 = arith.mulf %513, %514 : vector<8x128xf32>
    %516 = arith.mulf %443, %10 : vector<8x128xf32>
    %517 = arith.mulf %450, %28 : vector<8x128xf32>
    %518 = arith.addf %516, %517 : vector<8x128xf32>
    %519 = arith.mulf %457, %25 : vector<8x128xf32>
    %520 = arith.addf %518, %519 : vector<8x128xf32>
    %cst_81 = arith.constant 1.250000e-01 : f32
    %521 = vector.broadcast %cst_81 : f32 to vector<8x128xf32>
    %522 = arith.mulf %520, %521 : vector<8x128xf32>
    %523 = arith.mulf %443, %4 : vector<8x128xf32>
    %524 = arith.mulf %450, %7 : vector<8x128xf32>
    %525 = arith.addf %523, %524 : vector<8x128xf32>
    %526 = arith.mulf %457, %19 : vector<8x128xf32>
    %527 = arith.addf %525, %526 : vector<8x128xf32>
    %cst_82 = arith.constant 1.250000e-01 : f32
    %528 = vector.broadcast %cst_82 : f32 to vector<8x128xf32>
    %529 = arith.mulf %527, %528 : vector<8x128xf32>
    %530 = arith.addf %458, %473 : vector<8x128xf32>
    %531 = arith.addf %459, %480 : vector<8x128xf32>
    %532 = arith.addf %460, %487 : vector<8x128xf32>
    %533 = arith.addf %461, %494 : vector<8x128xf32>
    %534 = arith.addf %462, %501 : vector<8x128xf32>
    %535 = arith.addf %463, %508 : vector<8x128xf32>
    %536 = arith.addf %464, %515 : vector<8x128xf32>
    %537 = arith.addf %465, %522 : vector<8x128xf32>
    %538 = arith.addf %466, %529 : vector<8x128xf32>
    %539 = arith.mulf %473, %16 : vector<8x128xf32>
    %540 = arith.mulf %480, %13 : vector<8x128xf32>
    %541 = arith.addf %539, %540 : vector<8x128xf32>
    %542 = arith.mulf %487, %22 : vector<8x128xf32>
    %543 = arith.addf %541, %542 : vector<8x128xf32>
    %cst_83 = arith.constant 0.111111112 : f32
    %544 = vector.broadcast %cst_83 : f32 to vector<8x128xf32>
    %545 = arith.mulf %543, %544 : vector<8x128xf32>
    %546 = arith.mulf %473, %10 : vector<8x128xf32>
    %547 = arith.mulf %480, %28 : vector<8x128xf32>
    %548 = arith.addf %546, %547 : vector<8x128xf32>
    %549 = arith.mulf %487, %25 : vector<8x128xf32>
    %550 = arith.addf %548, %549 : vector<8x128xf32>
    %cst_84 = arith.constant 0.111111112 : f32
    %551 = vector.broadcast %cst_84 : f32 to vector<8x128xf32>
    %552 = arith.mulf %550, %551 : vector<8x128xf32>
    %553 = arith.mulf %473, %4 : vector<8x128xf32>
    %554 = arith.mulf %480, %7 : vector<8x128xf32>
    %555 = arith.addf %553, %554 : vector<8x128xf32>
    %556 = arith.mulf %487, %19 : vector<8x128xf32>
    %557 = arith.addf %555, %556 : vector<8x128xf32>
    %cst_85 = arith.constant 0.111111112 : f32
    %558 = vector.broadcast %cst_85 : f32 to vector<8x128xf32>
    %559 = arith.mulf %557, %558 : vector<8x128xf32>
    %560 = arith.mulf %494, %16 : vector<8x128xf32>
    %561 = arith.mulf %501, %13 : vector<8x128xf32>
    %562 = arith.addf %560, %561 : vector<8x128xf32>
    %563 = arith.mulf %508, %22 : vector<8x128xf32>
    %564 = arith.addf %562, %563 : vector<8x128xf32>
    %cst_86 = arith.constant 0.111111112 : f32
    %565 = vector.broadcast %cst_86 : f32 to vector<8x128xf32>
    %566 = arith.mulf %564, %565 : vector<8x128xf32>
    %567 = arith.mulf %494, %10 : vector<8x128xf32>
    %568 = arith.mulf %501, %28 : vector<8x128xf32>
    %569 = arith.addf %567, %568 : vector<8x128xf32>
    %570 = arith.mulf %508, %25 : vector<8x128xf32>
    %571 = arith.addf %569, %570 : vector<8x128xf32>
    %cst_87 = arith.constant 0.111111112 : f32
    %572 = vector.broadcast %cst_87 : f32 to vector<8x128xf32>
    %573 = arith.mulf %571, %572 : vector<8x128xf32>
    %574 = arith.mulf %494, %4 : vector<8x128xf32>
    %575 = arith.mulf %501, %7 : vector<8x128xf32>
    %576 = arith.addf %574, %575 : vector<8x128xf32>
    %577 = arith.mulf %508, %19 : vector<8x128xf32>
    %578 = arith.addf %576, %577 : vector<8x128xf32>
    %cst_88 = arith.constant 0.111111112 : f32
    %579 = vector.broadcast %cst_88 : f32 to vector<8x128xf32>
    %580 = arith.mulf %578, %579 : vector<8x128xf32>
    %581 = arith.mulf %515, %16 : vector<8x128xf32>
    %582 = arith.mulf %522, %13 : vector<8x128xf32>
    %583 = arith.addf %581, %582 : vector<8x128xf32>
    %584 = arith.mulf %529, %22 : vector<8x128xf32>
    %585 = arith.addf %583, %584 : vector<8x128xf32>
    %cst_89 = arith.constant 0.111111112 : f32
    %586 = vector.broadcast %cst_89 : f32 to vector<8x128xf32>
    %587 = arith.mulf %585, %586 : vector<8x128xf32>
    %588 = arith.mulf %515, %10 : vector<8x128xf32>
    %589 = arith.mulf %522, %28 : vector<8x128xf32>
    %590 = arith.addf %588, %589 : vector<8x128xf32>
    %591 = arith.mulf %529, %25 : vector<8x128xf32>
    %592 = arith.addf %590, %591 : vector<8x128xf32>
    %cst_90 = arith.constant 0.111111112 : f32
    %593 = vector.broadcast %cst_90 : f32 to vector<8x128xf32>
    %594 = arith.mulf %592, %593 : vector<8x128xf32>
    %595 = arith.mulf %515, %4 : vector<8x128xf32>
    %596 = arith.mulf %522, %7 : vector<8x128xf32>
    %597 = arith.addf %595, %596 : vector<8x128xf32>
    %598 = arith.mulf %529, %19 : vector<8x128xf32>
    %599 = arith.addf %597, %598 : vector<8x128xf32>
    %cst_91 = arith.constant 0.111111112 : f32
    %600 = vector.broadcast %cst_91 : f32 to vector<8x128xf32>
    %601 = arith.mulf %599, %600 : vector<8x128xf32>
    %602 = arith.addf %530, %545 : vector<8x128xf32>
    %603 = arith.addf %531, %552 : vector<8x128xf32>
    %604 = arith.addf %532, %559 : vector<8x128xf32>
    %605 = arith.addf %533, %566 : vector<8x128xf32>
    %606 = arith.addf %534, %573 : vector<8x128xf32>
    %607 = arith.addf %535, %580 : vector<8x128xf32>
    %608 = arith.addf %536, %587 : vector<8x128xf32>
    %609 = arith.addf %537, %594 : vector<8x128xf32>
    %610 = arith.addf %538, %601 : vector<8x128xf32>
    %c0_92 = arith.constant 0 : index
    %611 = arith.index_cast %1 : i32 to index
    %c0_93 = arith.constant 0 : index
    %c0_94 = arith.constant 0 : index
    %612 = vector.load %arg2[%c0_92, %611, %c0_93, %c0_94] : memref<9x1x8x128xf32, #tpu.memory_space<vmem>>, vector<1x1x8x128xf32>
    %613 = vector.shape_cast %612 : vector<1x1x8x128xf32> to vector<8x128xf32>
    %614 = vector.shape_cast %602 : vector<8x128xf32> to vector<1x1x8x128xf32>
    tpu.vector_store %arg2[%c0_92, %611, %c0_93, %c0_94], %614 {strides = array<i32>} : memref<9x1x8x128xf32, #tpu.memory_space<vmem>>, vector<1x1x8x128xf32>,
    %c1_95 = arith.constant 1 : index
    %615 = arith.index_cast %1 : i32 to index
    %c0_96 = arith.constant 0 : index
    %c0_97 = arith.constant 0 : index
    %616 = vector.load %arg2[%c1_95, %615, %c0_96, %c0_97] : memref<9x1x8x128xf32, #tpu.memory_space<vmem>>, vector<1x1x8x128xf32>
    %617 = vector.shape_cast %616 : vector<1x1x8x128xf32> to vector<8x128xf32>
    %618 = vector.shape_cast %603 : vector<8x128xf32> to vector<1x1x8x128xf32>
    tpu.vector_store %arg2[%c1_95, %615, %c0_96, %c0_97], %618 {strides = array<i32>} : memref<9x1x8x128xf32, #tpu.memory_space<vmem>>, vector<1x1x8x128xf32>,
    %c2_98 = arith.constant 2 : index
    %619 = arith.index_cast %1 : i32 to index
    %c0_99 = arith.constant 0 : index
    %c0_100 = arith.constant 0 : index
    %620 = vector.load %arg2[%c2_98, %619, %c0_99, %c0_100] : memref<9x1x8x128xf32, #tpu.memory_space<vmem>>, vector<1x1x8x128xf32>
    %621 = vector.shape_cast %620 : vector<1x1x8x128xf32> to vector<8x128xf32>
    %622 = vector.shape_cast %604 : vector<8x128xf32> to vector<1x1x8x128xf32>
    tpu.vector_store %arg2[%c2_98, %619, %c0_99, %c0_100], %622 {strides = array<i32>} : memref<9x1x8x128xf32, #tpu.memory_space<vmem>>, vector<1x1x8x128xf32>,
    %c3_101 = arith.constant 3 : index
    %623 = arith.index_cast %1 : i32 to index
    %c0_102 = arith.constant 0 : index
    %c0_103 = arith.constant 0 : index
    %624 = vector.load %arg2[%c3_101, %623, %c0_102, %c0_103] : memref<9x1x8x128xf32, #tpu.memory_space<vmem>>, vector<1x1x8x128xf32>
    %625 = vector.shape_cast %624 : vector<1x1x8x128xf32> to vector<8x128xf32>
    %626 = vector.shape_cast %605 : vector<8x128xf32> to vector<1x1x8x128xf32>
    tpu.vector_store %arg2[%c3_101, %623, %c0_102, %c0_103], %626 {strides = array<i32>} : memref<9x1x8x128xf32, #tpu.memory_space<vmem>>, vector<1x1x8x128xf32>,
    %c4_104 = arith.constant 4 : index
    %627 = arith.index_cast %1 : i32 to index
    %c0_105 = arith.constant 0 : index
    %c0_106 = arith.constant 0 : index
    %628 = vector.load %arg2[%c4_104, %627, %c0_105, %c0_106] : memref<9x1x8x128xf32, #tpu.memory_space<vmem>>, vector<1x1x8x128xf32>
    %629 = vector.shape_cast %628 : vector<1x1x8x128xf32> to vector<8x128xf32>
    %630 = vector.shape_cast %606 : vector<8x128xf32> to vector<1x1x8x128xf32>
    tpu.vector_store %arg2[%c4_104, %627, %c0_105, %c0_106], %630 {strides = array<i32>} : memref<9x1x8x128xf32, #tpu.memory_space<vmem>>, vector<1x1x8x128xf32>,
    %c5_107 = arith.constant 5 : index
    %631 = arith.index_cast %1 : i32 to index
    %c0_108 = arith.constant 0 : index
    %c0_109 = arith.constant 0 : index
    %632 = vector.load %arg2[%c5_107, %631, %c0_108, %c0_109] : memref<9x1x8x128xf32, #tpu.memory_space<vmem>>, vector<1x1x8x128xf32>
    %633 = vector.shape_cast %632 : vector<1x1x8x128xf32> to vector<8x128xf32>
    %634 = vector.shape_cast %607 : vector<8x128xf32> to vector<1x1x8x128xf32>
    tpu.vector_store %arg2[%c5_107, %631, %c0_108, %c0_109], %634 {strides = array<i32>} : memref<9x1x8x128xf32, #tpu.memory_space<vmem>>, vector<1x1x8x128xf32>,
    %c6_110 = arith.constant 6 : index
    %635 = arith.index_cast %1 : i32 to index
    %c0_111 = arith.constant 0 : index
    %c0_112 = arith.constant 0 : index
    %636 = vector.load %arg2[%c6_110, %635, %c0_111, %c0_112] : memref<9x1x8x128xf32, #tpu.memory_space<vmem>>, vector<1x1x8x128xf32>
    %637 = vector.shape_cast %636 : vector<1x1x8x128xf32> to vector<8x128xf32>
    %638 = vector.shape_cast %608 : vector<8x128xf32> to vector<1x1x8x128xf32>
    tpu.vector_store %arg2[%c6_110, %635, %c0_111, %c0_112], %638 {strides = array<i32>} : memref<9x1x8x128xf32, #tpu.memory_space<vmem>>, vector<1x1x8x128xf32>,
    %c7_113 = arith.constant 7 : index
    %639 = arith.index_cast %1 : i32 to index
    %c0_114 = arith.constant 0 : index
    %c0_115 = arith.constant 0 : index
    %640 = vector.load %arg2[%c7_113, %639, %c0_114, %c0_115] : memref<9x1x8x128xf32, #tpu.memory_space<vmem>>, vector<1x1x8x128xf32>
    %641 = vector.shape_cast %640 : vector<1x1x8x128xf32> to vector<8x128xf32>
    %642 = vector.shape_cast %609 : vector<8x128xf32> to vector<1x1x8x128xf32>
    tpu.vector_store %arg2[%c7_113, %639, %c0_114, %c0_115], %642 {strides = array<i32>} : memref<9x1x8x128xf32, #tpu.memory_space<vmem>>, vector<1x1x8x128xf32>,
    %c8 = arith.constant 8 : index
    %643 = arith.index_cast %1 : i32 to index
    %c0_116 = arith.constant 0 : index
    %c0_117 = arith.constant 0 : index
    %644 = vector.load %arg2[%c8, %643, %c0_116, %c0_117] : memref<9x1x8x128xf32, #tpu.memory_space<vmem>>, vector<1x1x8x128xf32>
    %645 = vector.shape_cast %644 : vector<1x1x8x128xf32> to vector<8x128xf32>
    %646 = vector.shape_cast %610 : vector<8x128xf32> to vector<1x1x8x128xf32>
    tpu.vector_store %arg2[%c8, %643, %c0_116, %c0_117], %646 {strides = array<i32>} : memref<9x1x8x128xf32, #tpu.memory_space<vmem>>, vector<1x1x8x128xf32>,
    %c1_i32_118 = arith.constant 1 : i32
    return
  }
  func.func @transform_0(%arg0: i32) -> (i32, i32, i32, i32) {
    %c0_i32 = arith.constant 0 : i32
    %c0_i32_0 = arith.constant 0 : i32
    %c0_i32_1 = arith.constant 0 : i32
    %c0_i32_2 = arith.constant 0 : i32
    return %c0_i32, %arg0, %c0_i32_0, %c0_i32_1 : i32, i32, i32, i32
  }
  func.func @transform_1(%arg0: i32) -> (i32, i32, i32, i32) {
    %c0_i32 = arith.constant 0 : i32
    %c0_i32_0 = arith.constant 0 : i32
    %c0_i32_1 = arith.constant 0 : i32
    %c0_i32_2 = arith.constant 0 : i32
    return %c0_i32, %arg0, %c0_i32_0, %c0_i32_1 : i32, i32, i32, i32
  }
}

</mosaic_0001>

<llo_original>
// kernel: tpu_custom_call.1
$region0: #{tpu_custom_call.1}
  #allocation0 [shape = 'u32[]', space=smem, size = 0x4, offset = 0x4, fixed_abs, tag = 'smem constant byte address 0x4 - core index']
  #allocation1 [shape = 'u32[144,128]{1,0:T(1,128)}', space=vmem, size = 0x12000, scoped, tag = 'internal scratch']
  %s0 = inlined_call_operand.hbm [shape: f32[8,1,8,128], index: 0, kind: input, shape index: {}]
  %s1 = inlined_call_operand.hbm [shape: f32[9,1,8,128], index: 1, kind: output, shape index: {}]
  %s2 = sld [smem:[#allocation0]]
  $region18: #{tpu_custom_call.1} parent=0
    _
  %s4 = ssub.s32 1, %s2
  %s5 = scalar_select 0, %s4, %s2
  $region1: #{tpu_custom_call.1} parent=0
    #allocation2 [shape = 'u8[32768]{0}', space=vmem, size = 0x8000, scoped, tag = 'input window, operand 0, single buffered']
    #allocation3 [shape = 's32[1]{0}', space=sflag, size = 0x4, scoped, tag = 'scoped memory for tpu_custom_call.1']
    #allocation4 [shape = 's32[1]{0}', space=sflag, size = 0x4, scoped, tag = 'scoped memory for tpu_custom_call.1']
    #allocation5 [shape = 'u8[36864]{0}', space=vmem, size = 0x9000, scoped, tag = 'output window, operand 0, single buffered']
    %6 = vsyncpa [#allocation3], 0
    %7 = vsyncpa [#allocation4], 0
    // Predicated region
    $region2: #{tpu_custom_call.1} parent=1 // pred_check
      _
    $region3: #{tpu_custom_call.1} parent=1 // pred_check_branch
      %9 = sbr.rel (0) target = $region5
    $region4: #{tpu_custom_call.1} parent=1 // pred_region
      %s11 = ssub.s32 1024, 1024
      %12 = vsyncadd [#allocation3], %s11
      %s13 = sshll.u32 [#allocation2], 4
      %s14 = int_to_ptr.vmem [resolvable:$true] %s13
      %19 = dma.hbm_to_vmem [thread:$0]  %s0, 1024, %s14, [#allocation3], 128, 128, 8
    $region5: #{tpu_custom_call.1} parent=1 // pred_fallthru
      _
    // Predicated region
    $region6: #{tpu_custom_call.1} parent=1 // pred_check
      _
    $region7: #{tpu_custom_call.1} parent=1 // pred_check_branch
      %21 = sbr.rel (0) target = $region9
    $region8: #{tpu_custom_call.1} parent=1 // pred_region
      %22 = dma.done [#allocation3], 1024
    $region9: #{tpu_custom_call.1} parent=1 // pred_fallthru
      _
    %v23 = vld [vmem:[#allocation2] sm:$0xff]
    %s24 = scalar_lea.vmem [#allocation2], 8
    %v25 = vld [vmem:[%s24] sm:$0xff]
    %s26 = scalar_lea.vmem [#allocation2], 16
    %v27 = vld [vmem:[%s26] sm:$0xff]
    %s28 = scalar_lea.vmem [#allocation2], 24
    %v29 = vld [vmem:[%s28] sm:$0xff]
    %s30 = scalar_lea.vmem [#allocation2], 32
    %v31 = vld [vmem:[%s30] sm:$0xff]
    %s32 = scalar_lea.vmem [#allocation2], 40
    %v33 = vld [vmem:[%s32] sm:$0xff]
    %s34 = scalar_lea.vmem [#allocation2], 48
    %v35 = vld [vmem:[%s34] sm:$0xff]
    %s36 = scalar_lea.vmem [#allocation2], 56
    %v37 = vld [vmem:[%s36] sm:$0xff]
    %v38 = vadd.f32 %v31, %v33
    %v39 = vsub.f32 0.0, %v38
    %v40 = vadd.f32 %v31, 1.0
    %v41 = vadd.f32 %v39, 1.0
    %v42 = vadd.f32 %v33, 1.0
    %v43 = vmul.f32 %v31, %v31
    %v44 = vmul.f32 %v27, %v29
    %v45 = vadd.f32 %v43, %v44
    %v46 = vmul.f32 %v23, %v35
    %v47 = vadd.f32 %v45, %v46
    %v48 = vmul.f32 %v47, 0.5
    %v49 = vmul.f32 %v31, %v27
    %v50 = vmul.f32 %v27, %v39
    %v51 = vadd.f32 %v49, %v50
    %v52 = vmul.f32 %v23, %v37
    %v53 = vadd.f32 %v51, %v52
    %v54 = vmul.f32 %v53, 0.5
    %v55 = vmul.f32 %v31, %v23
    %v56 = vmul.f32 %v27, %v25
    %v57 = vadd.f32 %v55, %v56
    %v58 = vmul.f32 %v23, %v33
    %v59 = vadd.f32 %v57, %v58
    %v60 = vmul.f32 %v59, 0.5
    %v61 = vmul.f32 %v29, %v31
    %v62 = vmul.f32 %v39, %v29
    %v63 = vadd.f32 %v61, %v62
    %v64 = vmul.f32 %v25, %v35
    %v65 = vadd.f32 %v63, %v64
    %v66 = vmul.f32 %v65, 0.5
    %v67 = vmul.f32 %v39, %v39
    %v68 = vadd.f32 %v44, %v67
    %v69 = vmul.f32 %v25, %v37
    %v70 = vadd.f32 %v68, %v69
    %v71 = vmul.f32 %v70, 0.5
    %v72 = vmul.f32 %v29, %v23
    %v73 = vmul.f32 %v39, %v25
    %v74 = vadd.f32 %v72, %v73
    %v75 = vmul.f32 %v25, %v33
    %v76 = vadd.f32 %v74, %v75
    %v77 = vmul.f32 %v76, 0.5
    %v78 = vmul.f32 %v35, %v31
    %v79 = vmul.f32 %v37, %v29
    %v80 = vadd.f32 %v78, %v79
    %v81 = vmul.f32 %v33, %v35
    %v82 = vadd.f32 %v80, %v81
    %v83 = vmul.f32 %v82, 0.5
    %v84 = vmul.f32 %v35, %v27
    %v85 = vmul.f32 %v37, %v39
    %v86 = vadd.f32 %v84, %v85
    %v87 = vmul.f32 %v33, %v37
    %v88 = vadd.f32 %v86, %v87
    %v89 = vmul.f32 %v88, 0.5
    %v90 = vadd.f32 %v46, %v69
    %v91 = vmul.f32 %v33, %v33
    %v92 = vadd.f32 %v90, %v91
    %v93 = vmul.f32 %v92, 0.5
    %v94 = vadd.f32 %v40, %v48
    %v95 = vadd.f32 %v27, %v54
    %v96 = vadd.f32 %v23, %v60
    %v97 = vadd.f32 %v29, %v66
    %v98 = vadd.f32 %v41, %v71
    %v99 = vadd.f32 %v25, %v77
    %v100 = vadd.f32 %v35, %v83
    %v101 = vadd.f32 %v37, %v89
    %v102 = vadd.f32 %v42, %v93
    %v103 = vmul.f32 %v48, %v31
    %v104 = vmul.f32 %v54, %v29
    %v105 = vadd.f32 %v103, %v104
    %v106 = vmul.f32 %v60, %v35
    %v107 = vadd.f32 %v105, %v106
    %v108 = vmul.f32 %v107, 0.33333334
    %v109 = vmul.f32 %v48, %v27
    %v110 = vmul.f32 %v54, %v39
    %v111 = vadd.f32 %v109, %v110
    %v112 = vmul.f32 %v60, %v37
    %v113 = vadd.f32 %v111, %v112
    %v114 = vmul.f32 %v113, 0.33333334
    %v115 = vmul.f32 %v48, %v23
    %v116 = vmul.f32 %v54, %v25
    %v117 = vadd.f32 %v115, %v116
    %v118 = vmul.f32 %v60, %v33
    %v119 = vadd.f32 %v117, %v118
    %v120 = vmul.f32 %v119, 0.33333334
    %v121 = vmul.f32 %v66, %v31
    %v122 = vmul.f32 %v71, %v29
    %v123 = vadd.f32 %v121, %v122
    %v124 = vmul.f32 %v77, %v35
    %v125 = vadd.f32 %v123, %v124
    %v126 = vmul.f32 %v125, 0.33333334
    %v127 = vmul.f32 %v66, %v27
    %v128 = vmul.f32 %v71, %v39
    %v129 = vadd.f32 %v127, %v128
    %v130 = vmul.f32 %v77, %v37
    %v131 = vadd.f32 %v129, %v130
    %v132 = vmul.f32 %v131, 0.33333334
    %v133 = vmul.f32 %v66, %v23
    %v134 = vmul.f32 %v71, %v25
    %v135 = vadd.f32 %v133, %v134
    %v136 = vmul.f32 %v77, %v33
    %v137 = vadd.f32 %v135, %v136
    %v138 = vmul.f32 %v137, 0.33333334
    %v139 = vmul.f32 %v83, %v31
    %v140 = vmul.f32 %v89, %v29
    %v141 = vadd.f32 %v139, %v140
    %v142 = vmul.f32 %v93, %v35
    %v143 = vadd.f32 %v141, %v142
    %v144 = vmul.f32 %v143, 0.33333334
    %v145 = vmul.f32 %v83, %v27
    %v146 = vmul.f32 %v89, %v39
    %v147 = vadd.f32 %v145, %v146
    %v148 = vmul.f32 %v93, %v37
    %v149 = vadd.f32 %v147, %v148
    %v150 = vmul.f32 %v149, 0.33333334
    %v151 = vmul.f32 %v83, %v23
    %v152 = vmul.f32 %v89, %v25
    %v153 = vadd.f32 %v151, %v152
    %v154 = vmul.f32 %v93, %v33
    %v155 = vadd.f32 %v153, %v154
    %v156 = vmul.f32 %v155, 0.33333334
    %v157 = vadd.f32 %v94, %v108
    %v158 = vadd.f32 %v95, %v114
    %v159 = vadd.f32 %v96, %v120
    %v160 = vadd.f32 %v97, %v126
    %v161 = vadd.f32 %v98, %v132
    %v162 = vadd.f32 %v99, %v138
    %v163 = vadd.f32 %v100, %v144
    %v164 = vadd.f32 %v101, %v150
    %v165 = vadd.f32 %v102, %v156
    %v166 = vmul.f32 %v108, %v31
    %v167 = vmul.f32 %v114, %v29
    %v168 = vadd.f32 %v166, %v167
    %v169 = vmul.f32 %v120, %v35
    %v170 = vadd.f32 %v168, %v169
    %v171 = vmul.f32 %v170, 0.25
    %v172 = vmul.f32 %v108, %v27
    %v173 = vmul.f32 %v114, %v39
    %v174 = vadd.f32 %v172, %v173
    %v175 = vmul.f32 %v120, %v37
    %v176 = vadd.f32 %v174, %v175
    %v177 = vmul.f32 %v176, 0.25
    %v178 = vmul.f32 %v108, %v23
    %v179 = vmul.f32 %v114, %v25
    %v180 = vadd.f32 %v178, %v179
    %v181 = vmul.f32 %v120, %v33
    %v182 = vadd.f32 %v180, %v181
    %v183 = vmul.f32 %v182, 0.25
    %v184 = vmul.f32 %v126, %v31
    %v185 = vmul.f32 %v132, %v29
    %v186 = vadd.f32 %v184, %v185
    %v187 = vmul.f32 %v138, %v35
    %v188 = vadd.f32 %v186, %v187
    %v189 = vmul.f32 %v188, 0.25
    %v190 = vmul.f32 %v126, %v27
    %v191 = vmul.f32 %v132, %v39
    %v192 = vadd.f32 %v190, %v191
    %v193 = vmul.f32 %v138, %v37
    %v194 = vadd.f32 %v192, %v193
    %v195 = vmul.f32 %v194, 0.25
    %v196 = vmul.f32 %v126, %v23
    %v197 = vmul.f32 %v132, %v25
    %v198 = vadd.f32 %v196, %v197
    %v199 = vmul.f32 %v138, %v33
    %v200 = vadd.f32 %v198, %v199
    %v201 = vmul.f32 %v200, 0.25
    %v202 = vmul.f32 %v144, %v31
    %v203 = vmul.f32 %v150, %v29
    %v204 = vadd.f32 %v202, %v203
    %v205 = vmul.f32 %v156, %v35
    %v206 = vadd.f32 %v204, %v205
    %v207 = vmul.f32 %v206, 0.25
    %v208 = vmul.f32 %v144, %v27
    %v209 = vmul.f32 %v150, %v39
    %v210 = vadd.f32 %v208, %v209
    %v211 = vmul.f32 %v156, %v37
    %v212 = vadd.f32 %v210, %v211
    %v213 = vmul.f32 %v212, 0.25
    %v214 = vmul.f32 %v144, %v23
    %v215 = vmul.f32 %v150, %v25
    %v216 = vadd.f32 %v214, %v215
    %v217 = vmul.f32 %v156, %v33
    %v218 = vadd.f32 %v216, %v217
    %v219 = vmul.f32 %v218, 0.25
    %v220 = vadd.f32 %v157, %v171
    %v221 = vadd.f32 %v158, %v177
    %v222 = vadd.f32 %v159, %v183
    %v223 = vadd.f32 %v160, %v189
    %v224 = vadd.f32 %v161, %v195
    %v225 = vadd.f32 %v162, %v201
    %v226 = vadd.f32 %v163, %v207
    %v227 = vadd.f32 %v164, %v213
    %v228 = vadd.f32 %v165, %v219
    %v229 = vmul.f32 %v171, %v31
    %v230 = vmul.f32 %v177, %v29
    %v231 = vadd.f32 %v229, %v230
    %v232 = vmul.f32 %v183, %v35
    %v233 = vadd.f32 %v231, %v232
    %v234 = vmul.f32 %v233, 0.2
    %v235 = vmul.f32 %v171, %v27
    %v236 = vmul.f32 %v177, %v39
    %v237 = vadd.f32 %v235, %v236
    %v238 = vmul.f32 %v183, %v37
    %v239 = vadd.f32 %v237, %v238
    %v240 = vmul.f32 %v239, 0.2
    %v241 = vmul.f32 %v171, %v23
    %v242 = vmul.f32 %v177, %v25
    %v243 = vadd.f32 %v241, %v242
    %v244 = vmul.f32 %v183, %v33
    %v245 = vadd.f32 %v243, %v244
    %v246 = vmul.f32 %v245, 0.2
    %v247 = vmul.f32 %v189, %v31
    %v248 = vmul.f32 %v195, %v29
    %v249 = vadd.f32 %v247, %v248
    %v250 = vmul.f32 %v201, %v35
    %v251 = vadd.f32 %v249, %v250
    %v252 = vmul.f32 %v251, 0.2
    %v253 = vmul.f32 %v189, %v27
    %v254 = vmul.f32 %v195, %v39
    %v255 = vadd.f32 %v253, %v254
    %v256 = vmul.f32 %v201, %v37
    %v257 = vadd.f32 %v255, %v256
    %v258 = vmul.f32 %v257, 0.2
    %v259 = vmul.f32 %v189, %v23
    %v260 = vmul.f32 %v195, %v25
    %v261 = vadd.f32 %v259, %v260
    %v262 = vmul.f32 %v201, %v33
    %v263 = vadd.f32 %v261, %v262
    %v264 = vmul.f32 %v263, 0.2
    %v265 = vmul.f32 %v207, %v31
    %v266 = vmul.f32 %v213, %v29
    %v267 = vadd.f32 %v265, %v266
    %v268 = vmul.f32 %v219, %v35
    %v269 = vadd.f32 %v267, %v268
    %v270 = vmul.f32 %v269, 0.2
    %v271 = vmul.f32 %v207, %v27
    %v272 = vmul.f32 %v213, %v39
    %v273 = vadd.f32 %v271, %v272
    %v274 = vmul.f32 %v219, %v37
    %v275 = vadd.f32 %v273, %v274
    %v276 = vmul.f32 %v275, 0.2
    %v277 = vmul.f32 %v207, %v23
    %v278 = vmul.f32 %v213, %v25
    %v279 = vadd.f32 %v277, %v278
    %v280 = vmul.f32 %v219, %v33
    %v281 = vadd.f32 %v279, %v280
    %v282 = vmul.f32 %v281, 0.2
    %v283 = vadd.f32 %v220, %v234
    %v284 = vadd.f32 %v221, %v240
    %v285 = vadd.f32 %v222, %v246
    %v286 = vadd.f32 %v223, %v252
    %v287 = vadd.f32 %v224, %v258
    %v288 = vadd.f32 %v225, %v264
    %v289 = vadd.f32 %v226, %v270
    %v290 = vadd.f32 %v227, %v276
    %v291 = vadd.f32 %v228, %v282
    %v292 = vmul.f32 %v234, %v31
    %v293 = vmul.f32 %v240, %v29
    %v294 = vadd.f32 %v292, %v293
    %v295 = vmul.f32 %v246, %v35
    %v296 = vadd.f32 %v294, %v295
    %v297 = vmul.f32 %v296, 0.16666667
    %v298 = vmul.f32 %v234, %v27
    %v299 = vmul.f32 %v240, %v39
    %v300 = vadd.f32 %v298, %v299
    %v301 = vmul.f32 %v246, %v37
    %v302 = vadd.f32 %v300, %v301
    %v303 = vmul.f32 %v302, 0.16666667
    %v304 = vmul.f32 %v234, %v23
    %v305 = vmul.f32 %v240, %v25
    %v306 = vadd.f32 %v304, %v305
    %v307 = vmul.f32 %v246, %v33
    %v308 = vadd.f32 %v306, %v307
    %v309 = vmul.f32 %v308, 0.16666667
    %v310 = vmul.f32 %v252, %v31
    %v311 = vmul.f32 %v258, %v29
    %v312 = vadd.f32 %v310, %v311
    %v313 = vmul.f32 %v264, %v35
    %v314 = vadd.f32 %v312, %v313
    %v315 = vmul.f32 %v314, 0.16666667
    %v316 = vmul.f32 %v252, %v27
    %v317 = vmul.f32 %v258, %v39
    %v318 = vadd.f32 %v316, %v317
    %v319 = vmul.f32 %v264, %v37
    %v320 = vadd.f32 %v318, %v319
    %v321 = vmul.f32 %v320, 0.16666667
    %v322 = vmul.f32 %v252, %v23
    %v323 = vmul.f32 %v258, %v25
    %v324 = vadd.f32 %v322, %v323
    %v325 = vmul.f32 %v264, %v33
    %v326 = vadd.f32 %v324, %v325
    %v327 = vmul.f32 %v326, 0.16666667
    %v328 = vmul.f32 %v270, %v31
    %v329 = vmul.f32 %v276, %v29
    %v330 = vadd.f32 %v328, %v329
    %v331 = vmul.f32 %v282, %v35
    %v332 = vadd.f32 %v330, %v331
    %v333 = vmul.f32 %v332, 0.16666667
    %v334 = vmul.f32 %v270, %v27
    %v335 = vmul.f32 %v276, %v39
    %v336 = vadd.f32 %v334, %v335
    %v337 = vmul.f32 %v282, %v37
    %v338 = vadd.f32 %v336, %v337
    %v339 = vmul.f32 %v338, 0.16666667
    %v340 = vmul.f32 %v270, %v23
    %v341 = vmul.f32 %v276, %v25
    %v342 = vadd.f32 %v340, %v341
    %v343 = vmul.f32 %v282, %v33
    %v344 = vadd.f32 %v342, %v343
    %v345 = vmul.f32 %v344, 0.16666667
    %v346 = vadd.f32 %v283, %v297
    %v347 = vadd.f32 %v284, %v303
    %v348 = vadd.f32 %v285, %v309
    %v349 = vadd.f32 %v286, %v315
    %v350 = vadd.f32 %v287, %v321
    %v351 = vadd.f32 %v288, %v327
    %v352 = vadd.f32 %v289, %v333
    %v353 = vadd.f32 %v290, %v339
    %v354 = vadd.f32 %v291, %v345
    %v355 = vmul.f32 %v297, %v31
    %v356 = vmul.f32 %v303, %v29
    %v357 = vadd.f32 %v355, %v356
    %v358 = vmul.f32 %v309, %v35
    %v359 = vadd.f32 %v357, %v358
    %v360 = vmul.f32 %v359, 0.14285715
    %v361 = vmul.f32 %v297, %v27
    %v362 = vmul.f32 %v303, %v39
    %v363 = vadd.f32 %v361, %v362
    %v364 = vmul.f32 %v309, %v37
    %v365 = vadd.f32 %v363, %v364
    %v366 = vmul.f32 %v365, 0.14285715
    %v367 = vmul.f32 %v297, %v23
    %v368 = vmul.f32 %v303, %v25
    %v369 = vadd.f32 %v367, %v368
    %v370 = vmul.f32 %v309, %v33
    %v371 = vadd.f32 %v369, %v370
    %v372 = vmul.f32 %v371, 0.14285715
    %v373 = vmul.f32 %v315, %v31
    %v374 = vmul.f32 %v321, %v29
    %v375 = vadd.f32 %v373, %v374
    %v376 = vmul.f32 %v327, %v35
    %v377 = vadd.f32 %v375, %v376
    %v378 = vmul.f32 %v377, 0.14285715
    %v379 = vmul.f32 %v315, %v27
    %v380 = vmul.f32 %v321, %v39
    %v381 = vadd.f32 %v379, %v380
    %v382 = vmul.f32 %v327, %v37
    %v383 = vadd.f32 %v381, %v382
    %v384 = vmul.f32 %v383, 0.14285715
    %v385 = vmul.f32 %v315, %v23
    %v386 = vmul.f32 %v321, %v25
    %v387 = vadd.f32 %v385, %v386
    %v388 = vmul.f32 %v327, %v33
    %v389 = vadd.f32 %v387, %v388
    %v390 = vmul.f32 %v389, 0.14285715
    %v391 = vmul.f32 %v333, %v31
    %v392 = vmul.f32 %v339, %v29
    %v393 = vadd.f32 %v391, %v392
    %v394 = vmul.f32 %v345, %v35
    %v395 = vadd.f32 %v393, %v394
    %v396 = vmul.f32 %v395, 0.14285715
    %v397 = vmul.f32 %v333, %v27
    %v398 = vmul.f32 %v339, %v39
    %v399 = vadd.f32 %v397, %v398
    %v400 = vmul.f32 %v345, %v37
    %v401 = vadd.f32 %v399, %v400
    %v402 = vmul.f32 %v401, 0.14285715
    %v403 = vmul.f32 %v333, %v23
    %v404 = vmul.f32 %v339, %v25
    %v405 = vadd.f32 %v403, %v404
    %v406 = vmul.f32 %v345, %v33
    %v407 = vadd.f32 %v405, %v406
    %v408 = vmul.f32 %v407, 0.14285715
    %v409 = vadd.f32 %v346, %v360
    %v410 = vadd.f32 %v347, %v366
    %v411 = vadd.f32 %v348, %v372
    %v412 = vadd.f32 %v349, %v378
    %v413 = vadd.f32 %v350, %v384
    %v414 = vadd.f32 %v351, %v390
    %v415 = vadd.f32 %v352, %v396
    %v416 = vadd.f32 %v353, %v402
    %v417 = vadd.f32 %v354, %v408
    %v418 = vmul.f32 %v360, %v31
    %v419 = vmul.f32 %v366, %v29
    %v420 = vadd.f32 %v418, %v419
    %v421 = vmul.f32 %v372, %v35
    %v422 = vadd.f32 %v420, %v421
    %v423 = vmul.f32 %v422, 0.125
    %v424 = vmul.f32 %v360, %v27
    %v425 = vmul.f32 %v366, %v39
    %v426 = vadd.f32 %v424, %v425
    %v427 = vmul.f32 %v372, %v37
    %v428 = vadd.f32 %v426, %v427
    %v429 = vmul.f32 %v428, 0.125
    %v430 = vmul.f32 %v360, %v23
    %v431 = vmul.f32 %v366, %v25
    %v432 = vadd.f32 %v430, %v431
    %v433 = vmul.f32 %v372, %v33
    %v434 = vadd.f32 %v432, %v433
    %v435 = vmul.f32 %v434, 0.125
    %v436 = vmul.f32 %v378, %v31
    %v437 = vmul.f32 %v384, %v29
    %v438 = vadd.f32 %v436, %v437
    %v439 = vmul.f32 %v390, %v35
    %v440 = vadd.f32 %v438, %v439
    %v441 = vmul.f32 %v440, 0.125
    %v442 = vmul.f32 %v378, %v27
    %v443 = vmul.f32 %v384, %v39
    %v444 = vadd.f32 %v442, %v443
    %v445 = vmul.f32 %v390, %v37
    %v446 = vadd.f32 %v444, %v445
    %v447 = vmul.f32 %v446, 0.125
    %v448 = vmul.f32 %v378, %v23
    %v449 = vmul.f32 %v384, %v25
    %v450 = vadd.f32 %v448, %v449
    %v451 = vmul.f32 %v390, %v33
    %v452 = vadd.f32 %v450, %v451
    %v453 = vmul.f32 %v452, 0.125
    %v454 = vmul.f32 %v396, %v31
    %v455 = vmul.f32 %v402, %v29
    %v456 = vadd.f32 %v454, %v455
    %v457 = vmul.f32 %v408, %v35
    %v458 = vadd.f32 %v456, %v457
    %v459 = vmul.f32 %v458, 0.125
    %v460 = vmul.f32 %v396, %v27
    %v461 = vmul.f32 %v402, %v39
    %v462 = vadd.f32 %v460, %v461
    %v463 = vmul.f32 %v408, %v37
    %v464 = vadd.f32 %v462, %v463
    %v465 = vmul.f32 %v464, 0.125
    %v466 = vmul.f32 %v396, %v23
    %v467 = vmul.f32 %v402, %v25
    %v468 = vadd.f32 %v466, %v467
    %v469 = vmul.f32 %v408, %v33
    %v470 = vadd.f32 %v468, %v469
    %v471 = vmul.f32 %v470, 0.125
    %v472 = vadd.f32 %v409, %v423
    %v473 = vadd.f32 %v410, %v429
    %v474 = vadd.f32 %v411, %v435
    %v475 = vadd.f32 %v412, %v441
    %v476 = vadd.f32 %v413, %v447
    %v477 = vadd.f32 %v414, %v453
    %v478 = vadd.f32 %v415, %v459
    %v479 = vadd.f32 %v416, %v465
    %v480 = vadd.f32 %v417, %v471
    %v481 = vmul.f32 %v423, %v31
    %v482 = vmul.f32 %v429, %v29
    %v483 = vadd.f32 %v481, %v482
    %v484 = vmul.f32 %v435, %v35
    %v485 = vadd.f32 %v483, %v484
    %v486 = vmul.f32 %v485, 0.11111111
    %v487 = vmul.f32 %v423, %v27
    %v488 = vmul.f32 %v429, %v39
    %v489 = vadd.f32 %v487, %v488
    %v490 = vmul.f32 %v435, %v37
    %v491 = vadd.f32 %v489, %v490
    %v492 = vmul.f32 %v491, 0.11111111
    %v493 = vmul.f32 %v423, %v23
    %v494 = vmul.f32 %v429, %v25
    %v495 = vadd.f32 %v493, %v494
    %v496 = vmul.f32 %v435, %v33
    %v497 = vadd.f32 %v495, %v496
    %v498 = vmul.f32 %v497, 0.11111111
    %v499 = vmul.f32 %v441, %v31
    %v500 = vmul.f32 %v447, %v29
    %v501 = vadd.f32 %v499, %v500
    %v502 = vmul.f32 %v453, %v35
    %v503 = vadd.f32 %v501, %v502
    %v504 = vmul.f32 %v503, 0.11111111
    %v505 = vmul.f32 %v441, %v27
    %v506 = vmul.f32 %v447, %v39
    %v507 = vadd.f32 %v505, %v506
    %v508 = vmul.f32 %v453, %v37
    %v509 = vadd.f32 %v507, %v508
    %v510 = vmul.f32 %v509, 0.11111111
    %v511 = vmul.f32 %v441, %v23
    %v512 = vmul.f32 %v447, %v25
    %v513 = vadd.f32 %v511, %v512
    %v514 = vmul.f32 %v453, %v33
    %v515 = vadd.f32 %v513, %v514
    %v516 = vmul.f32 %v515, 0.11111111
    %v517 = vmul.f32 %v459, %v31
    %v518 = vmul.f32 %v465, %v29
    %v519 = vadd.f32 %v517, %v518
    %v520 = vmul.f32 %v471, %v35
    %v521 = vadd.f32 %v519, %v520
    %v522 = vmul.f32 %v521, 0.11111111
    %v523 = vmul.f32 %v459, %v27
    %v524 = vmul.f32 %v465, %v39
    %v525 = vadd.f32 %v523, %v524
    %v526 = vmul.f32 %v471, %v37
    %v527 = vadd.f32 %v525, %v526
    %v528 = vmul.f32 %v527, 0.11111111
    %v529 = vmul.f32 %v459, %v23
    %v530 = vmul.f32 %v465, %v25
    %v531 = vadd.f32 %v529, %v530
    %v532 = vmul.f32 %v471, %v33
    %v533 = vadd.f32 %v531, %v532
    %v534 = vmul.f32 %v533, 0.11111111
    %v535 = vadd.f32 %v472, %v486
    %v536 = vadd.f32 %v473, %v492
    %v537 = vadd.f32 %v474, %v498
    %v538 = vadd.f32 %v475, %v504
    %v539 = vadd.f32 %v476, %v510
    %v540 = vadd.f32 %v477, %v516
    %v541 = vadd.f32 %v478, %v522
    %v542 = vadd.f32 %v479, %v528
    %v543 = vadd.f32 %v480, %v534
    %544 = vst [vmem:[#allocation5] sm:$0xff] %v535
    %s545 = scalar_lea.vmem [#allocation5], 8
    %546 = vst [vmem:[%s545] sm:$0xff] %v536
    %s547 = scalar_lea.vmem [#allocation5], 16
    %548 = vst [vmem:[%s547] sm:$0xff] %v537
    %s549 = scalar_lea.vmem [#allocation5], 24
    %550 = vst [vmem:[%s549] sm:$0xff] %v538
    %s551 = scalar_lea.vmem [#allocation5], 32
    %552 = vst [vmem:[%s551] sm:$0xff] %v539
    %s553 = scalar_lea.vmem [#allocation5], 40
    %554 = vst [vmem:[%s553] sm:$0xff] %v540
    %s555 = scalar_lea.vmem [#allocation5], 48
    %556 = vst [vmem:[%s555] sm:$0xff] %v541
    %s557 = scalar_lea.vmem [#allocation5], 56
    %558 = vst [vmem:[%s557] sm:$0xff] %v542
    %s559 = scalar_lea.vmem [#allocation5], 64
    %560 = vst [vmem:[%s559] sm:$0xff] %v543
    // Predicated region
    $region10: #{tpu_custom_call.1} parent=1 // pred_check
      _
    $region11: #{tpu_custom_call.1} parent=1 // pred_check_branch
      %562 = sbr.rel (0) target = $region13
    $region12: #{tpu_custom_call.1} parent=1 // pred_region
      %s564 = ssub.s32 1152, 1152
      %565 = vsyncadd [#allocation4], %s564
      %s566 = sshll.u32 [#allocation5], 4
      %s567 = int_to_ptr.vmem [resolvable:$true] %s566
      %572 = dma.vmem_to_hbm [thread:$0]  %s567, 1152, %s1, [#allocation4], 128, 128, 8
    $region13: #{tpu_custom_call.1} parent=1 // pred_fallthru
      _
    // Predicated region
    $region14: #{tpu_custom_call.1} parent=1 // pred_check
      _
    $region15: #{tpu_custom_call.1} parent=1 // pred_check_branch
      %574 = sbr.rel (0) target = $region17
    $region16: #{tpu_custom_call.1} parent=1 // pred_region
      %575 = dma.done [#allocation4], 1152
    $region17: #{tpu_custom_call.1} parent=1 // pred_fallthru
      _
    %576 = vsyncpa [#allocation3], 1
    %577 = vsyncpa [#allocation4], 1

</llo_original>
